<compile_context>
chip_gen: v5e
topology: v5e:2x2
jax: 0.10.0
libtpu: 0.0.40
codegen_flags: <defaults>
</compile_context>

<pallas_src>
import jax
import jax.numpy as jnp
from jax.experimental import pallas as pl
from jax.experimental.pallas import tpu as pltpu

NB_ACTIONS = 8   # env.nb_actions (synthetic choice for this test script)
OBS_DIM = 7
H1 = 512
H2 = 256


def qnet_kernel(obs_ref,
                w1_ref, b1_ref,          # obs_fc1:    (7, 512) bf16, (1, 512) f32
                wh_ref, bh_ref,          # fused head: (512, 512) bf16, (1, 512) f32
                wo_ref, bo_ref,          # fused out:  (512, A+1) bf16, (1, A+1) f32
                out_ref):                # (B, A) f32
    A = out_ref.shape[1]

    # obs_fc1 + ReLU  (bf16 matmul inputs, f32 accumulation)
    h = jnp.dot(obs_ref[...].astype(jnp.bfloat16), w1_ref[...],
                preferred_element_type=jnp.float32)
    h = jnp.maximum(h + b1_ref[...], 0.0)                        # (B, 512) f32

    # Fused head first layers: [adv_fc1 | val_fc1] as one (512, 512) matmul.
    y = jnp.dot(h.astype(jnp.bfloat16), wh_ref[...],
                preferred_element_type=jnp.float32)
    y = jnp.maximum(y + bh_ref[...], 0.0)                        # (B, 512) f32

    # Fused block-diagonal output layer: [[adv_fc2, 0], [0, val_fc2]]
    # -> columns [0:A] are adv, column [A] is val (zeros kill cross terms).
    z = jnp.dot(y.astype(jnp.bfloat16), wo_ref[...],
                preferred_element_type=jnp.float32) + bo_ref[...]  # (B, A+1) f32

    adv = z[:, :A]
    val = z[:, A:A + 1]

    # output = val + adv - adv.mean()   (mean over ALL elements of adv)
    out_ref[...] = val + adv - jnp.mean(adv)


def fuse_params(p):
    """Fuse the per-layer f32 params into the bf16 kernel layout."""
    A = p["wa2"].shape[1]
    w1 = p["w1"].astype(jnp.bfloat16)                                   # (7, 512)
    b1 = p["b1"]                                                        # (1, 512)
    wh = jnp.concatenate([p["wa1"], p["wv1"]], axis=1).astype(jnp.bfloat16)  # (512, 512)
    bh = jnp.concatenate([p["ba1"], p["bv1"]], axis=1)                  # (1, 512)
    wo = jnp.zeros((2 * H2, A + 1), jnp.float32)
    wo = wo.at[:H2, :A].set(p["wa2"]).at[H2:, A:].set(p["wv2"])
    wo = wo.astype(jnp.bfloat16)                                        # (512, A+1)
    bo = jnp.concatenate([p["ba2"], p["bv2"]], axis=1)                  # (1, A+1)
    return dict(w1=w1, b1=b1, wh=wh, bh=bh, wo=wo, bo=bo)


def qnet_forward(obs, fp):
    B = obs.shape[0]
    A = fp["wo"].shape[1] - 1
    vmem = pl.BlockSpec(memory_space=pltpu.MemorySpace.VMEM)
    args = (obs, fp["w1"], fp["b1"], fp["wh"], fp["bh"], fp["wo"], fp["bo"])

    flops = 2 * B * (OBS_DIM * H1 + H1 * (2 * H2) + (2 * H2) * (A + 1))
    bytes_accessed = int(sum(int(x.size) * x.dtype.itemsize for x in args)
                         + B * A * 4)

    return pl.pallas_call(
        qnet_kernel,
        out_shape=jax.ShapeDtypeStruct((B, A), jnp.float32),
        in_specs=[vmem] * len(args),
        out_specs=vmem,
        cost_estimate=pl.CostEstimate(flops=flops,
                                      transcendentals=0,
                                      bytes_accessed=bytes_accessed),
    )(*args)


def init_params(key, nb_actions=NB_ACTIONS):
    """Deterministic init mimicking PyTorch nn.Linear defaults
    (uniform(-1/sqrt(fan_in), 1/sqrt(fan_in)) for weight and bias)."""
    def linear(key, fan_in, fan_out):
        kw, kb = jax.random.split(key)
        bound = 1.0 / jnp.sqrt(jnp.float32(fan_in))
        w = jax.random.uniform(kw, (fan_in, fan_out), jnp.float32, -bound, bound)
        b = jax.random.uniform(kb, (1, fan_out), jnp.float32, -bound, bound)
        return w, b

    k1, k2, k3, k4, k5 = jax.random.split(key, 5)
    w1, b1 = linear(k1, OBS_DIM, H1)
    wa1, ba1 = linear(k2, H1, H2)
    wa2, ba2 = linear(k3, H2, nb_actions)
    wv1, bv1 = linear(k4, H1, H2)
    wv2, bv2 = linear(k5, H2, 1)
    return dict(w1=w1, b1=b1,
                wa1=wa1, ba1=ba1, wa2=wa2, ba2=ba2,
                wv1=wv1, bv1=bv1, wv2=wv2, bv2=bv2)


def qnet_ref(obs, p):
    """Pure-JAX f32 reference for correctness check (original module math)."""
    h = jnp.maximum(obs @ p["w1"] + p["b1"], 0.0)
    adv = jnp.maximum(h @ p["wa1"] + p["ba1"], 0.0) @ p["wa2"] + p["ba2"]
    val = jnp.maximum(h @ p["wv1"] + p["bv1"], 0.0) @ p["wv2"] + p["bv2"]
    return val + adv - jnp.mean(adv)


if __name__ == "__main__":
    key = jax.random.PRNGKey(0)
    k_obs, k_params = jax.random.split(key)

    B = 2
    obs = jax.random.normal(k_obs, (B, OBS_DIM), jnp.float32)  # 7 observation features
    params = init_params(k_params, NB_ACTIONS)
    fused = fuse_params(params)

    out = qnet_forward(obs, fused)
    out = jax.block_until_ready(out)

    ref = qnet_ref(obs, params)
    assert out.shape == (B, NB_ACTIONS)
    # bf16 weight/activation streaming => relaxed tolerance vs f32 reference.
    assert jnp.allclose(out, ref, atol=5e-2, rtol=5e-2), "mismatch vs reference"

    print("KERNEL_OK")
</pallas_src>

<mosaic_0001>
module attributes {stable_mosaic.version = 11 : i64} {
  func.func @qnet_kernel(%arg0: memref<2x7xf32, #tpu.memory_space<vmem>>, %arg1: memref<7x512xbf16, #tpu.memory_space<vmem>>, %arg2: memref<1x512xf32, #tpu.memory_space<vmem>>, %arg3: memref<512x512xbf16, #tpu.memory_space<vmem>>, %arg4: memref<1x512xf32, #tpu.memory_space<vmem>>, %arg5: memref<512x9xbf16, #tpu.memory_space<vmem>>, %arg6: memref<1x9xf32, #tpu.memory_space<vmem>>, %arg7: memref<2x8xf32, #tpu.memory_space<vmem>>) attributes {dimension_semantics = [], scalar_prefetch = 0 : i64, scratch_operands = 0 : i64, tpu.core_type = #tpu.core_type<tc>} {
    %c0 = arith.constant 0 : index
    %c0_0 = arith.constant 0 : index
    %0 = vector.load %arg0[%c0, %c0_0] : memref<2x7xf32, #tpu.memory_space<vmem>>, vector<2x7xf32>
    %1 = arith.truncf %0 : vector<2x7xf32> to vector<2x7xbf16>
    %c0_1 = arith.constant 0 : index
    %c0_2 = arith.constant 0 : index
    %2 = vector.load %arg1[%c0_1, %c0_2] : memref<7x512xbf16, #tpu.memory_space<vmem>>, vector<7x512xbf16>
    %cst = arith.constant dense<0.000000e+00> : vector<2x512xf32>
    %3 = tpu.matmul %1, %2, %cst {dimension_numbers = #tpu.dot_dimension_numbers<[1], [0], [0], [1], [0, 0, 1, 1], [], []>} : vector<2x7xbf16>, vector<7x512xbf16>, vector<2x512xf32> -> vector<2x512xf32>
    %c0_3 = arith.constant 0 : index
    %c0_4 = arith.constant 0 : index
    %4 = vector.load %arg2[%c0_3, %c0_4] : memref<1x512xf32, #tpu.memory_space<vmem>>, vector<1x512xf32>
    %5 = vector.broadcast %4 : vector<1x512xf32> to vector<2x512xf32>
    %6 = arith.addf %3, %5 : vector<2x512xf32>
    %cst_5 = arith.constant 0.000000e+00 : f32
    %7 = vector.broadcast %cst_5 : f32 to vector<2x512xf32>
    %8 = arith.maximumf %6, %7 : vector<2x512xf32>
    %9 = arith.truncf %8 : vector<2x512xf32> to vector<2x512xbf16>
    %c0_6 = arith.constant 0 : index
    %c0_7 = arith.constant 0 : index
    %10 = vector.load %arg3[%c0_6, %c0_7] : memref<512x512xbf16, #tpu.memory_space<vmem>>, vector<512x512xbf16>
    %cst_8 = arith.constant dense<0.000000e+00> : vector<2x512xf32>
    %11 = tpu.matmul %9, %10, %cst_8 {dimension_numbers = #tpu.dot_dimension_numbers<[1], [0], [0], [1], [0, 0, 1, 1], [], []>} : vector<2x512xbf16>, vector<512x512xbf16>, vector<2x512xf32> -> vector<2x512xf32>
    %c0_9 = arith.constant 0 : index
    %c0_10 = arith.constant 0 : index
    %12 = vector.load %arg4[%c0_9, %c0_10] : memref<1x512xf32, #tpu.memory_space<vmem>>, vector<1x512xf32>
    %13 = vector.broadcast %12 : vector<1x512xf32> to vector<2x512xf32>
    %14 = arith.addf %11, %13 : vector<2x512xf32>
    %cst_11 = arith.constant 0.000000e+00 : f32
    %15 = vector.broadcast %cst_11 : f32 to vector<2x512xf32>
    %16 = arith.maximumf %14, %15 : vector<2x512xf32>
    %17 = arith.truncf %16 : vector<2x512xf32> to vector<2x512xbf16>
    %c0_12 = arith.constant 0 : index
    %c0_13 = arith.constant 0 : index
    %18 = vector.load %arg5[%c0_12, %c0_13] : memref<512x9xbf16, #tpu.memory_space<vmem>>, vector<512x9xbf16>
    %cst_14 = arith.constant dense<0.000000e+00> : vector<2x9xf32>
    %19 = tpu.matmul %17, %18, %cst_14 {dimension_numbers = #tpu.dot_dimension_numbers<[1], [0], [0], [1], [0, 0, 1, 1], [], []>} : vector<2x512xbf16>, vector<512x9xbf16>, vector<2x9xf32> -> vector<2x9xf32>
    %c0_15 = arith.constant 0 : index
    %c0_16 = arith.constant 0 : index
    %20 = vector.load %arg6[%c0_15, %c0_16] : memref<1x9xf32, #tpu.memory_space<vmem>>, vector<1x9xf32>
    %21 = vector.broadcast %20 : vector<1x9xf32> to vector<2x9xf32>
    %22 = arith.addf %19, %21 : vector<2x9xf32>
    %23 = vector.extract_strided_slice %22 {offsets = [0, 0], sizes = [2, 8], strides = [1, 1]} : vector<2x9xf32> to vector<2x8xf32>
    %24 = vector.extract_strided_slice %22 {offsets = [0, 8], sizes = [2, 1], strides = [1, 1]} : vector<2x9xf32> to vector<2x1xf32>
    %25 = vector.broadcast %24 : vector<2x1xf32> to vector<2x8xf32>
    %26 = arith.addf %25, %23 : vector<2x8xf32>
    %27 = vector.shape_cast %23 : vector<2x8xf32> to vector<1x2x8xf32>
    %cst_17 = arith.constant dense<0.000000e+00> : vector<1xf32>
    %28 = vector.multi_reduction <add>, %27, %cst_17 [1, 2] : vector<1x2x8xf32> to vector<1xf32>
    %29 = vector.shape_cast %28 : vector<1xf32> to vector<1x1x1xf32>
    %30 = vector.extract %29[0, 0, 0] : f32 from vector<1x1x1xf32>
    %cst_18 = arith.constant 1.600000e+01 : f32
    %31 = arith.divf %30, %cst_18 : f32
    %32 = vector.broadcast %31 : f32 to vector<2x8xf32>
    %33 = arith.subf %26, %32 : vector<2x8xf32>
    %c0_19 = arith.constant 0 : index
    %c0_20 = arith.constant 0 : index
    %34 = vector.load %arg7[%c0_19, %c0_20] : memref<2x8xf32, #tpu.memory_space<vmem>>, vector<2x8xf32>
    tpu.vector_store %arg7[%c0_19, %c0_20], %33 {strides = array<i32>} : memref<2x8xf32, #tpu.memory_space<vmem>>, vector<2x8xf32>,
    return
  }
}

</mosaic_0001>

<llo_original>
// kernel: tpu_custom_call.1
$region0: #{tpu_custom_call.1}
  #allocation0 [shape = 'u32[]', space=smem, size = 0x4, offset = 0x4, fixed_abs, tag = 'smem constant byte address 0x4 - core index']
  #allocation1 [shape = 'u32[72,128]{1,0:T(1,128)}', space=vmem, size = 0x9000, scoped, tag = 'internal scratch']
  %s0 = inlined_call_operand.vmem [shape: f32[2,7], index: 0, kind: input, shape index: {}]
  %s1 = inlined_call_operand.vmem [shape: bf16[7,512], index: 1, kind: input, shape index: {}]
  %s2 = inlined_call_operand.vmem [shape: f32[1,512], index: 2, kind: input, shape index: {}]
  %s3 = inlined_call_operand.hbm [shape: bf16[512,512], index: 3, kind: input, shape index: {}]
  %s4 = inlined_call_operand.vmem [shape: f32[1,512], index: 4, kind: input, shape index: {}]
  %s5 = inlined_call_operand.vmem [shape: bf16[512,9], index: 5, kind: input, shape index: {}]
  %s6 = inlined_call_operand.vmem [shape: f32[1,9], index: 6, kind: input, shape index: {}]
  %s7 = inlined_call_operand.hbm [shape: f32[2,8], index: 7, kind: output, shape index: {}]
  %s8 = sld [smem:[#allocation0]]
  $region42: #{tpu_custom_call.1} parent=0
    _
  %s10 = ssub.s32 1, %s8
  %s11 = scalar_select 0, %s10, %s8
  $region1: #{tpu_custom_call.1} parent=0
    #allocation2 [shape = 'u8[524288]{0}', space=vmem, size = 0x80000, scoped, tag = 'input window, operand 3, single buffered']
    #allocation3 [shape = 's32[1]{0}', space=sflag, size = 0x4, scoped, tag = 'scoped memory for tpu_custom_call.1']
    #allocation4 [shape = 's32[1]{0}', space=sflag, size = 0x4, scoped, tag = 'scoped memory for tpu_custom_call.1']
    #allocation5 [shape = 'u8[1024]{0}', space=vmem, size = 0x400, scoped, tag = 'output window, operand 0, single buffered']
    %12 = vsyncpa [#allocation3], 0
    %13 = vsyncpa [#allocation4], 0
    // Predicated region
    $region2: #{tpu_custom_call.1} parent=1 // pred_check
      _
    $region3: #{tpu_custom_call.1} parent=1 // pred_check_branch
      %15 = sbr.rel (0) target = $region5
    $region4: #{tpu_custom_call.1} parent=1 // pred_region
      _
    $region5: #{tpu_custom_call.1} parent=1 // pred_fallthru
      _
    // Predicated region
    $region6: #{tpu_custom_call.1} parent=1 // pred_check
      _
    $region7: #{tpu_custom_call.1} parent=1 // pred_check_branch
      %17 = sbr.rel (0) target = $region9
    $region8: #{tpu_custom_call.1} parent=1 // pred_region
      _
    $region9: #{tpu_custom_call.1} parent=1 // pred_fallthru
      _
    // Predicated region
    $region10: #{tpu_custom_call.1} parent=1 // pred_check
      _
    $region11: #{tpu_custom_call.1} parent=1 // pred_check_branch
      %19 = sbr.rel (0) target = $region13
    $region12: #{tpu_custom_call.1} parent=1 // pred_region
      _
    $region13: #{tpu_custom_call.1} parent=1 // pred_fallthru
      _
    // Predicated region
    $region14: #{tpu_custom_call.1} parent=1 // pred_check
      _
    $region15: #{tpu_custom_call.1} parent=1 // pred_check_branch
      %21 = sbr.rel (0) target = $region17
    $region16: #{tpu_custom_call.1} parent=1 // pred_region
      %23 = vsyncadd [#allocation3], 0
      %s24 = sshll.u32 %s3, 4
      %s25 = int_to_ptr.hbm [resolvable:$true] %s24
      %s26 = sshll.u32 [#allocation2], 4
      %s27 = int_to_ptr.vmem [resolvable:$true] %s26
      %32 = dma.hbm_to_vmem [thread:$0]  %s25, 16384, %s27, [#allocation3], 256, 256, 16
    $region17: #{tpu_custom_call.1} parent=1 // pred_fallthru
      _
    // Predicated region
    $region18: #{tpu_custom_call.1} parent=1 // pred_check
      _
    $region19: #{tpu_custom_call.1} parent=1 // pred_check_branch
      %34 = sbr.rel (0) target = $region21
    $region20: #{tpu_custom_call.1} parent=1 // pred_region
      _
    $region21: #{tpu_custom_call.1} parent=1 // pred_fallthru
      _
    // Predicated region
    $region22: #{tpu_custom_call.1} parent=1 // pred_check
      _
    $region23: #{tpu_custom_call.1} parent=1 // pred_check_branch
      %36 = sbr.rel (0) target = $region25
    $region24: #{tpu_custom_call.1} parent=1 // pred_region
      _
    $region25: #{tpu_custom_call.1} parent=1 // pred_fallthru
      _
    // Predicated region
    $region26: #{tpu_custom_call.1} parent=1 // pred_check
      _
    $region27: #{tpu_custom_call.1} parent=1 // pred_check_branch
      %38 = sbr.rel (0) target = $region29
    $region28: #{tpu_custom_call.1} parent=1 // pred_region
      _
    $region29: #{tpu_custom_call.1} parent=1 // pred_fallthru
      _
    // Predicated region
    $region30: #{tpu_custom_call.1} parent=1 // pred_check
      _
    $region31: #{tpu_custom_call.1} parent=1 // pred_check_branch
      %40 = sbr.rel (0) target = $region33
    $region32: #{tpu_custom_call.1} parent=1 // pred_region
      %42 = dma.done [#allocation3], 16384
    $region33: #{tpu_custom_call.1} parent=1 // pred_fallthru
      _
    %v44 = vld [vmem:[%s0] sm:$0x3]
    %v45 = vpack.c.bf16 %v44, %v44
    %v46 = vld [vmem:[%s1] sm:$0xff]
    %v47 = vld [vmem:[%s1 + $0x8] sm:$0xff]
    %v48 = vld [vmem:[%s2] sm:$0xf]
    %v50 = vperm.slane %v48, 0
    %v51 = vperm.slane %v48, 1
    %v52 = vperm.slane %v48, 2
    %v53 = vperm.slane %v48, 3
    %v60 = vunpack.c.l.b16 %v46
    %v61 = vunpack.c.h.b16 %v46
    %v62 = vunpack.c.l.b16 %v47
    %v63 = vunpack.c.h.b16 %v47
    %v64 = vpack.c.b16 %v60, %v60
    %v65 = vpack.c.b16 %v61, %v61
    %v66 = vpack.c.b16 %v62, %v62
    %v67 = vpack.c.b16 %v63, %v63
    %vm68 = vcmask 56320
    %v70 = vsel %vm68, %v45, 0
    %vm72 = vcmask 1042432
    %vm73 = vcmask 1043456
    %v74 = vsel %vm72, 4294967295, 65535
    %v75 = vsel %vm73, %v74, 0
    %v77 = vand.u32 %v64, %v75
    %v80 = vand.u32 %v65, %v75
    %v83 = vand.u32 %v66, %v75
    %v86 = vand.u32 %v67, %v75
    %88 = vmatpush.bf16.msra.mxu0 0
    %89 = vmatpush.bf16.msra.mxu0 0
    %90 = vmatpush.bf16.msra.mxu0 0
    %91 = vmatpush.bf16.msra.mxu0 0
    %92 = vmatpush.bf16.msra.mxu0 0
    %93 = vmatpush.bf16.msra.mxu0 0
    %94 = vmatpush.bf16.msra.mxu0 0
    %95 = vmatpush.bf16.msra.mxu0 %v77
    %96 = vmatmul.bf16.gmra.mxu0 %v70
    %v97 = vpop.f32.mrf.mxu0
    %v98 = vadd.f32 %v50, %v97
    %v99 = vpop.f32.mrf.mxu0
    %100 = vdwg.mxu0
    %101 = vmatpush.bf16.msra.mxu0 0
    %102 = vmatpush.bf16.msra.mxu0 0
    %103 = vmatpush.bf16.msra.mxu0 0
    %104 = vmatpush.bf16.msra.mxu0 0
    %105 = vmatpush.bf16.msra.mxu0 0
    %106 = vmatpush.bf16.msra.mxu0 0
    %107 = vmatpush.bf16.msra.mxu0 0
    %108 = vmatpush.bf16.msra.mxu0 %v80
    %109 = vmatmul.bf16.gmra.mxu0 %v70
    %v110 = vpop.f32.mrf.mxu0
    %v111 = vadd.f32 %v51, %v110
    %v112 = vpop.f32.mrf.mxu0
    %113 = vdwg.mxu0
    %114 = vmatpush.bf16.msra.mxu0 0
    %115 = vmatpush.bf16.msra.mxu0 0
    %116 = vmatpush.bf16.msra.mxu0 0
    %117 = vmatpush.bf16.msra.mxu0 0
    %118 = vmatpush.bf16.msra.mxu0 0
    %119 = vmatpush.bf16.msra.mxu0 0
    %120 = vmatpush.bf16.msra.mxu0 0
    %121 = vmatpush.bf16.msra.mxu0 %v83
    %122 = vmatmul.bf16.gmra.mxu0 %v70
    %v123 = vpop.f32.mrf.mxu0
    %v124 = vadd.f32 %v52, %v123
    %v125 = vpop.f32.mrf.mxu0
    %126 = vdwg.mxu0
    %127 = vmatpush.bf16.msra.mxu0 0
    %128 = vmatpush.bf16.msra.mxu0 0
    %129 = vmatpush.bf16.msra.mxu0 0
    %130 = vmatpush.bf16.msra.mxu0 0
    %131 = vmatpush.bf16.msra.mxu0 0
    %132 = vmatpush.bf16.msra.mxu0 0
    %133 = vmatpush.bf16.msra.mxu0 0
    %134 = vmatpush.bf16.msra.mxu0 %v86
    %135 = vmatmul.bf16.gmra.mxu0 %v70
    %v136 = vpop.f32.mrf.mxu0
    %v137 = vadd.f32 %v53, %v136
    %v138 = vpop.f32.mrf.mxu0
    %139 = vdwg.mxu0
    %v140 = vmax.f32 %v98, 0.0
    %v141 = vmax.f32 %v111, 0.0
    %v142 = vmax.f32 %v124, 0.0
    %v143 = vmax.f32 %v137, 0.0
    %v144 = vpack.c.bf16 %v140, %v140
    %v145 = vpack.c.bf16 %v141, %v141
    %v146 = vpack.c.bf16 %v142, %v142
    %v147 = vpack.c.bf16 %v143, %v143
    %v148 = vld [vmem:[#allocation2] sm:$0xff]
    %v149 = vld [vmem:[#allocation2 + $0x8] sm:$0xff]
    %v150 = vld [vmem:[#allocation2 + $0x10] sm:$0xff]
    %v151 = vld [vmem:[#allocation2 + $0x18] sm:$0xff]
    %v152 = vld [vmem:[#allocation2 + $0x20] sm:$0xff]
    %v153 = vld [vmem:[#allocation2 + $0x28] sm:$0xff]
    %v154 = vld [vmem:[#allocation2 + $0x30] sm:$0xff]
    %v155 = vld [vmem:[#allocation2 + $0x38] sm:$0xff]
    %v156 = vld [vmem:[#allocation2 + $0x40] sm:$0xff]
    %v157 = vld [vmem:[#allocation2 + $0x48] sm:$0xff]
    %v158 = vld [vmem:[#allocation2 + $0x50] sm:$0xff]
    %v159 = vld [vmem:[#allocation2 + $0x58] sm:$0xff]
    %v160 = vld [vmem:[#allocation2 + $0x60] sm:$0xff]
    %v161 = vld [vmem:[#allocation2 + $0x68] sm:$0xff]
    %v162 = vld [vmem:[#allocation2 + $0x70] sm:$0xff]
    %v163 = vld [vmem:[#allocation2 + $0x78] sm:$0xff]
    %v164 = vld [vmem:[#allocation2 + $0x80] sm:$0xff]
    %v165 = vld [vmem:[#allocation2 + $0x88] sm:$0xff]
    %v166 = vld [vmem:[#allocation2 + $0x90] sm:$0xff]
    %v167 = vld [vmem:[#allocation2 + $0x98] sm:$0xff]
    %v168 = vld [vmem:[#allocation2 + $0xa0] sm:$0xff]
    %v169 = vld [vmem:[#allocation2 + $0xa8] sm:$0xff]
    %v170 = vld [vmem:[#allocation2 + $0xb0] sm:$0xff]
    %v171 = vld [vmem:[#allocation2 + $0xb8] sm:$0xff]
    %v172 = vld [vmem:[#allocation2 + $0xc0] sm:$0xff]
    %v173 = vld [vmem:[#allocation2 + $0xc8] sm:$0xff]
    %v174 = vld [vmem:[#allocation2 + $0xd0] sm:$0xff]
    %v175 = vld [vmem:[#allocation2 + $0xd8] sm:$0xff]
    %v176 = vld [vmem:[#allocation2 + $0xe0] sm:$0xff]
    %v177 = vld [vmem:[#allocation2 + $0xe8] sm:$0xff]
    %v178 = vld [vmem:[#allocation2 + $0xf0] sm:$0xff]
    %v179 = vld [vmem:[#allocation2 + $0xf8] sm:$0xff]
    %v180 = vld [vmem:[#allocation2 + $0x100] sm:$0xff]
    %v181 = vld [vmem:[#allocation2 + $0x108] sm:$0xff]
    %v182 = vld [vmem:[#allocation2 + $0x110] sm:$0xff]
    %v183 = vld [vmem:[#allocation2 + $0x118] sm:$0xff]
    %v184 = vld [vmem:[#allocation2 + $0x120] sm:$0xff]
    %v185 = vld [vmem:[#allocation2 + $0x128] sm:$0xff]
    %v186 = vld [vmem:[#allocation2 + $0x130] sm:$0xff]
    %v187 = vld [vmem:[#allocation2 + $0x138] sm:$0xff]
    %v188 = vld [vmem:[#allocation2 + $0x140] sm:$0xff]
    %v189 = vld [vmem:[#allocation2 + $0x148] sm:$0xff]
    %v190 = vld [vmem:[#allocation2 + $0x150] sm:$0xff]
    %v191 = vld [vmem:[#allocation2 + $0x158] sm:$0xff]
    %v192 = vld [vmem:[#allocation2 + $0x160] sm:$0xff]
    %v193 = vld [vmem:[#allocation2 + $0x168] sm:$0xff]
    %v194 = vld [vmem:[#allocation2 + $0x170] sm:$0xff]
    %v195 = vld [vmem:[#allocation2 + $0x178] sm:$0xff]
    %v196 = vld [vmem:[#allocation2 + $0x180] sm:$0xff]
    %v197 = vld [vmem:[#allocation2 + $0x188] sm:$0xff]
    %v198 = vld [vmem:[#allocation2 + $0x190] sm:$0xff]
    %v199 = vld [vmem:[#allocation2 + $0x198] sm:$0xff]
    %v200 = vld [vmem:[#allocation2 + $0x1a0] sm:$0xff]
    %v201 = vld [vmem:[#allocation2 + $0x1a8] sm:$0xff]
    %v202 = vld [vmem:[#allocation2 + $0x1b0] sm:$0xff]
    %v203 = vld [vmem:[#allocation2 + $0x1b8] sm:$0xff]
    %v204 = vld [vmem:[#allocation2 + $0x1c0] sm:$0xff]
    %v205 = vld [vmem:[#allocation2 + $0x1c8] sm:$0xff]
    %v206 = vld [vmem:[#allocation2 + $0x1d0] sm:$0xff]
    %v207 = vld [vmem:[#allocation2 + $0x1d8] sm:$0xff]
    %v208 = vld [vmem:[#allocation2 + $0x1e0] sm:$0xff]
    %v209 = vld [vmem:[#allocation2 + $0x1e8] sm:$0xff]
    %v210 = vld [vmem:[#allocation2 + $0x1f0] sm:$0xff]
    %v211 = vld [vmem:[#allocation2 + $0x1f8] sm:$0xff]
    %v212 = vld [vmem:[#allocation2 + $0x200] sm:$0xff]
    %v213 = vld [vmem:[#allocation2 + $0x208] sm:$0xff]
    %v214 = vld [vmem:[#allocation2 + $0x210] sm:$0xff]
    %v215 = vld [vmem:[#allocation2 + $0x218] sm:$0xff]
    %v216 = vld [vmem:[#allocation2 + $0x220] sm:$0xff]
    %v217 = vld [vmem:[#allocation2 + $0x228] sm:$0xff]
    %v218 = vld [vmem:[#allocation2 + $0x230] sm:$0xff]
    %v219 = vld [vmem:[#allocation2 + $0x238] sm:$0xff]
    %v220 = vld [vmem:[#allocation2 + $0x240] sm:$0xff]
    %v221 = vld [vmem:[#allocation2 + $0x248] sm:$0xff]
    %v222 = vld [vmem:[#allocation2 + $0x250] sm:$0xff]
    %v223 = vld [vmem:[#allocation2 + $0x258] sm:$0xff]
    %v224 = vld [vmem:[#allocation2 + $0x260] sm:$0xff]
    %v225 = vld [vmem:[#allocation2 + $0x268] sm:$0xff]
    %v226 = vld [vmem:[#allocation2 + $0x270] sm:$0xff]
    %v227 = vld [vmem:[#allocation2 + $0x278] sm:$0xff]
    %v228 = vld [vmem:[#allocation2 + $0x280] sm:$0xff]
    %v229 = vld [vmem:[#allocation2 + $0x288] sm:$0xff]
    %v230 = vld [vmem:[#allocation2 + $0x290] sm:$0xff]
    %v231 = vld [vmem:[#allocation2 + $0x298] sm:$0xff]
    %v232 = vld [vmem:[#allocation2 + $0x2a0] sm:$0xff]
    %v233 = vld [vmem:[#allocation2 + $0x2a8] sm:$0xff]
    %v234 = vld [vmem:[#allocation2 + $0x2b0] sm:$0xff]
    %v235 = vld [vmem:[#allocation2 + $0x2b8] sm:$0xff]
    %v236 = vld [vmem:[#allocation2 + $0x2c0] sm:$0xff]
    %v237 = vld [vmem:[#allocation2 + $0x2c8] sm:$0xff]
    %v238 = vld [vmem:[#allocation2 + $0x2d0] sm:$0xff]
    %v239 = vld [vmem:[#allocation2 + $0x2d8] sm:$0xff]
    %v240 = vld [vmem:[#allocation2 + $0x2e0] sm:$0xff]
    %v241 = vld [vmem:[#allocation2 + $0x2e8] sm:$0xff]
    %v242 = vld [vmem:[#allocation2 + $0x2f0] sm:$0xff]
    %v243 = vld [vmem:[#allocation2 + $0x2f8] sm:$0xff]
    %v244 = vld [vmem:[#allocation2 + $0x300] sm:$0xff]
    %v245 = vld [vmem:[#allocation2 + $0x308] sm:$0xff]
    %v246 = vld [vmem:[#allocation2 + $0x310] sm:$0xff]
    %v247 = vld [vmem:[#allocation2 + $0x318] sm:$0xff]
    %v248 = vld [vmem:[#allocation2 + $0x320] sm:$0xff]
    %v249 = vld [vmem:[#allocation2 + $0x328] sm:$0xff]
    %v250 = vld [vmem:[#allocation2 + $0x330] sm:$0xff]
    %v251 = vld [vmem:[#allocation2 + $0x338] sm:$0xff]
    %v252 = vld [vmem:[#allocation2 + $0x340] sm:$0xff]
    %v253 = vld [vmem:[#allocation2 + $0x348] sm:$0xff]
    %v254 = vld [vmem:[#allocation2 + $0x350] sm:$0xff]
    %v255 = vld [vmem:[#allocation2 + $0x358] sm:$0xff]
    %v256 = vld [vmem:[#allocation2 + $0x360] sm:$0xff]
    %v257 = vld [vmem:[#allocation2 + $0x368] sm:$0xff]
    %v258 = vld [vmem:[#allocation2 + $0x370] sm:$0xff]
    %v259 = vld [vmem:[#allocation2 + $0x378] sm:$0xff]
    %v260 = vld [vmem:[#allocation2 + $0x380] sm:$0xff]
    %v261 = vld [vmem:[#allocation2 + $0x388] sm:$0xff]
    %v262 = vld [vmem:[#allocation2 + $0x390] sm:$0xff]
    %v263 = vld [vmem:[#allocation2 + $0x398] sm:$0xff]
    %v264 = vld [vmem:[#allocation2 + $0x3a0] sm:$0xff]
    %v265 = vld [vmem:[#allocation2 + $0x3a8] sm:$0xff]
    %v266 = vld [vmem:[#allocation2 + $0x3b0] sm:$0xff]
    %v267 = vld [vmem:[#allocation2 + $0x3b8] sm:$0xff]
    %v268 = vld [vmem:[#allocation2 + $0x3c0] sm:$0xff]
    %v269 = vld [vmem:[#allocation2 + $0x3c8] sm:$0xff]
    %v270 = vld [vmem:[#allocation2 + $0x3d0] sm:$0xff]
    %v271 = vld [vmem:[#allocation2 + $0x3d8] sm:$0xff]
    %v272 = vld [vmem:[#allocation2 + $0x3e0] sm:$0xff]
    %v273 = vld [vmem:[#allocation2 + $0x3e8] sm:$0xff]
    %v274 = vld [vmem:[#allocation2 + $0x3f0] sm:$0xff]
    %v275 = vld [vmem:[#allocation2 + $0x3f8] sm:$0xff]
    %v276 = vld [vmem:[%s4] sm:$0xf]
    %v278 = vperm.slane %v276, 0
    %v279 = vperm.slane %v276, 1
    %v280 = vperm.slane %v276, 2
    %v281 = vperm.slane %v276, 3
    %v414 = vunpack.c.l.b16 %v148
    %v415 = vunpack.c.h.b16 %v148
    %v416 = vunpack.c.l.b16 %v149
    %v417 = vunpack.c.h.b16 %v149
    %v418 = vunpack.c.l.b16 %v150
    %v419 = vunpack.c.h.b16 %v150
    %v420 = vunpack.c.l.b16 %v151
    %v421 = vunpack.c.h.b16 %v151
    %v422 = vunpack.c.l.b16 %v152
    %v423 = vunpack.c.h.b16 %v152
    %v424 = vunpack.c.l.b16 %v153
    %v425 = vunpack.c.h.b16 %v153
    %v426 = vunpack.c.l.b16 %v154
    %v427 = vunpack.c.h.b16 %v154
    %v428 = vunpack.c.l.b16 %v155
    %v429 = vunpack.c.h.b16 %v155
    %v430 = vunpack.c.l.b16 %v156
    %v431 = vunpack.c.h.b16 %v156
    %v432 = vunpack.c.l.b16 %v157
    %v433 = vunpack.c.h.b16 %v157
    %v434 = vunpack.c.l.b16 %v158
    %v435 = vunpack.c.h.b16 %v158
    %v436 = vunpack.c.l.b16 %v159
    %v437 = vunpack.c.h.b16 %v159
    %v438 = vunpack.c.l.b16 %v160
    %v439 = vunpack.c.h.b16 %v160
    %v440 = vunpack.c.l.b16 %v161
    %v441 = vunpack.c.h.b16 %v161
    %v442 = vunpack.c.l.b16 %v162
    %v443 = vunpack.c.h.b16 %v162
    %v444 = vunpack.c.l.b16 %v163
    %v445 = vunpack.c.h.b16 %v163
    %v446 = vunpack.c.l.b16 %v164
    %v447 = vunpack.c.h.b16 %v164
    %v448 = vunpack.c.l.b16 %v165
    %v449 = vunpack.c.h.b16 %v165
    %v450 = vunpack.c.l.b16 %v166
    %v451 = vunpack.c.h.b16 %v166
    %v452 = vunpack.c.l.b16 %v167
    %v453 = vunpack.c.h.b16 %v167
    %v454 = vunpack.c.l.b16 %v168
    %v455 = vunpack.c.h.b16 %v168
    %v456 = vunpack.c.l.b16 %v169
    %v457 = vunpack.c.h.b16 %v169
    %v458 = vunpack.c.l.b16 %v170
    %v459 = vunpack.c.h.b16 %v170
    %v460 = vunpack.c.l.b16 %v171
    %v461 = vunpack.c.h.b16 %v171
    %v462 = vunpack.c.l.b16 %v172
    %v463 = vunpack.c.h.b16 %v172
    %v464 = vunpack.c.l.b16 %v173
    %v465 = vunpack.c.h.b16 %v173
    %v466 = vunpack.c.l.b16 %v174
    %v467 = vunpack.c.h.b16 %v174
    %v468 = vunpack.c.l.b16 %v175
    %v469 = vunpack.c.h.b16 %v175
    %v470 = vunpack.c.l.b16 %v176
    %v471 = vunpack.c.h.b16 %v176
    %v472 = vunpack.c.l.b16 %v177
    %v473 = vunpack.c.h.b16 %v177
    %v474 = vunpack.c.l.b16 %v178
    %v475 = vunpack.c.h.b16 %v178
    %v476 = vunpack.c.l.b16 %v179
    %v477 = vunpack.c.h.b16 %v179
    %v478 = vunpack.c.l.b16 %v180
    %v479 = vunpack.c.h.b16 %v180
    %v480 = vunpack.c.l.b16 %v181
    %v481 = vunpack.c.h.b16 %v181
    %v482 = vunpack.c.l.b16 %v182
    %v483 = vunpack.c.h.b16 %v182
    %v484 = vunpack.c.l.b16 %v183
    %v485 = vunpack.c.h.b16 %v183
    %v486 = vunpack.c.l.b16 %v184
    %v487 = vunpack.c.h.b16 %v184
    %v488 = vunpack.c.l.b16 %v185
    %v489 = vunpack.c.h.b16 %v185
    %v490 = vunpack.c.l.b16 %v186
    %v491 = vunpack.c.h.b16 %v186
    %v492 = vunpack.c.l.b16 %v187
    %v493 = vunpack.c.h.b16 %v187
    %v494 = vunpack.c.l.b16 %v188
    %v495 = vunpack.c.h.b16 %v188
    %v496 = vunpack.c.l.b16 %v189
    %v497 = vunpack.c.h.b16 %v189
    %v498 = vunpack.c.l.b16 %v190
    %v499 = vunpack.c.h.b16 %v190
    %v500 = vunpack.c.l.b16 %v191
    %v501 = vunpack.c.h.b16 %v191
    %v502 = vunpack.c.l.b16 %v192
    %v503 = vunpack.c.h.b16 %v192
    %v504 = vunpack.c.l.b16 %v193
    %v505 = vunpack.c.h.b16 %v193
    %v506 = vunpack.c.l.b16 %v194
    %v507 = vunpack.c.h.b16 %v194
    %v508 = vunpack.c.l.b16 %v195
    %v509 = vunpack.c.h.b16 %v195
    %v510 = vunpack.c.l.b16 %v196
    %v511 = vunpack.c.h.b16 %v196
    %v512 = vunpack.c.l.b16 %v197
    %v513 = vunpack.c.h.b16 %v197
    %v514 = vunpack.c.l.b16 %v198
    %v515 = vunpack.c.h.b16 %v198
    %v516 = vunpack.c.l.b16 %v199
    %v517 = vunpack.c.h.b16 %v199
    %v518 = vunpack.c.l.b16 %v200
    %v519 = vunpack.c.h.b16 %v200
    %v520 = vunpack.c.l.b16 %v201
    %v521 = vunpack.c.h.b16 %v201
    %v522 = vunpack.c.l.b16 %v202
    %v523 = vunpack.c.h.b16 %v202
    %v524 = vunpack.c.l.b16 %v203
    %v525 = vunpack.c.h.b16 %v203
    %v526 = vunpack.c.l.b16 %v204
    %v527 = vunpack.c.h.b16 %v204
    %v528 = vunpack.c.l.b16 %v205
    %v529 = vunpack.c.h.b16 %v205
    %v530 = vunpack.c.l.b16 %v206
    %v531 = vunpack.c.h.b16 %v206
    %v532 = vunpack.c.l.b16 %v207
    %v533 = vunpack.c.h.b16 %v207
    %v534 = vunpack.c.l.b16 %v208
    %v535 = vunpack.c.h.b16 %v208
    %v536 = vunpack.c.l.b16 %v209
    %v537 = vunpack.c.h.b16 %v209
    %v538 = vunpack.c.l.b16 %v210
    %v539 = vunpack.c.h.b16 %v210
    %v540 = vunpack.c.l.b16 %v211
    %v541 = vunpack.c.h.b16 %v211
    %v542 = vunpack.c.l.b16 %v212
    %v543 = vunpack.c.h.b16 %v212
    %v544 = vunpack.c.l.b16 %v213
    %v545 = vunpack.c.h.b16 %v213
    %v546 = vunpack.c.l.b16 %v214
    %v547 = vunpack.c.h.b16 %v214
    %v548 = vunpack.c.l.b16 %v215
    %v549 = vunpack.c.h.b16 %v215
    %v550 = vunpack.c.l.b16 %v216
    %v551 = vunpack.c.h.b16 %v216
    %v552 = vunpack.c.l.b16 %v217
    %v553 = vunpack.c.h.b16 %v217
    %v554 = vunpack.c.l.b16 %v218
    %v555 = vunpack.c.h.b16 %v218
    %v556 = vunpack.c.l.b16 %v219
    %v557 = vunpack.c.h.b16 %v219
    %v558 = vunpack.c.l.b16 %v220
    %v559 = vunpack.c.h.b16 %v220
    %v560 = vunpack.c.l.b16 %v221
    %v561 = vunpack.c.h.b16 %v221
    %v562 = vunpack.c.l.b16 %v222
    %v563 = vunpack.c.h.b16 %v222
    %v564 = vunpack.c.l.b16 %v223
    %v565 = vunpack.c.h.b16 %v223
    %v566 = vunpack.c.l.b16 %v224
    %v567 = vunpack.c.h.b16 %v224
    %v568 = vunpack.c.l.b16 %v225
    %v569 = vunpack.c.h.b16 %v225
    %v570 = vunpack.c.l.b16 %v226
    %v571 = vunpack.c.h.b16 %v226
    %v572 = vunpack.c.l.b16 %v227
    %v573 = vunpack.c.h.b16 %v227
    %v574 = vunpack.c.l.b16 %v228
    %v575 = vunpack.c.h.b16 %v228
    %v576 = vunpack.c.l.b16 %v229
    %v577 = vunpack.c.h.b16 %v229
    %v578 = vunpack.c.l.b16 %v230
    %v579 = vunpack.c.h.b16 %v230
    %v580 = vunpack.c.l.b16 %v231
    %v581 = vunpack.c.h.b16 %v231
    %v582 = vunpack.c.l.b16 %v232
    %v583 = vunpack.c.h.b16 %v232
    %v584 = vunpack.c.l.b16 %v233
    %v585 = vunpack.c.h.b16 %v233
    %v586 = vunpack.c.l.b16 %v234
    %v587 = vunpack.c.h.b16 %v234
    %v588 = vunpack.c.l.b16 %v235
    %v589 = vunpack.c.h.b16 %v235
    %v590 = vunpack.c.l.b16 %v236
    %v591 = vunpack.c.h.b16 %v236
    %v592 = vunpack.c.l.b16 %v237
    %v593 = vunpack.c.h.b16 %v237
    %v594 = vunpack.c.l.b16 %v238
    %v595 = vunpack.c.h.b16 %v238
    %v596 = vunpack.c.l.b16 %v239
    %v597 = vunpack.c.h.b16 %v239
    %v598 = vunpack.c.l.b16 %v240
    %v599 = vunpack.c.h.b16 %v240
    %v600 = vunpack.c.l.b16 %v241
    %v601 = vunpack.c.h.b16 %v241
    %v602 = vunpack.c.l.b16 %v242
    %v603 = vunpack.c.h.b16 %v242
    %v604 = vunpack.c.l.b16 %v243
    %v605 = vunpack.c.h.b16 %v243
    %v606 = vunpack.c.l.b16 %v244
    %v607 = vunpack.c.h.b16 %v244
    %v608 = vunpack.c.l.b16 %v245
    %v609 = vunpack.c.h.b16 %v245
    %v610 = vunpack.c.l.b16 %v246
    %v611 = vunpack.c.h.b16 %v246
    %v612 = vunpack.c.l.b16 %v247
    %v613 = vunpack.c.h.b16 %v247
    %v614 = vunpack.c.l.b16 %v248
    %v615 = vunpack.c.h.b16 %v248
    %v616 = vunpack.c.l.b16 %v249
    %v617 = vunpack.c.h.b16 %v249
    %v618 = vunpack.c.l.b16 %v250
    %v619 = vunpack.c.h.b16 %v250
    %v620 = vunpack.c.l.b16 %v251
    %v621 = vunpack.c.h.b16 %v251
    %v622 = vunpack.c.l.b16 %v252
    %v623 = vunpack.c.h.b16 %v252
    %v624 = vunpack.c.l.b16 %v253
    %v625 = vunpack.c.h.b16 %v253
    %v626 = vunpack.c.l.b16 %v254
    %v627 = vunpack.c.h.b16 %v254
    %v628 = vunpack.c.l.b16 %v255
    %v629 = vunpack.c.h.b16 %v255
    %v630 = vunpack.c.l.b16 %v256
    %v631 = vunpack.c.h.b16 %v256
    %v632 = vunpack.c.l.b16 %v257
    %v633 = vunpack.c.h.b16 %v257
    %v634 = vunpack.c.l.b16 %v258
    %v635 = vunpack.c.h.b16 %v258
    %v636 = vunpack.c.l.b16 %v259
    %v637 = vunpack.c.h.b16 %v259
    %v638 = vunpack.c.l.b16 %v260
    %v639 = vunpack.c.h.b16 %v260
    %v640 = vunpack.c.l.b16 %v261
    %v641 = vunpack.c.h.b16 %v261
    %v642 = vunpack.c.l.b16 %v262
    %v643 = vunpack.c.h.b16 %v262
    %v644 = vunpack.c.l.b16 %v263
    %v645 = vunpack.c.h.b16 %v263
    %v646 = vunpack.c.l.b16 %v264
    %v647 = vunpack.c.h.b16 %v264
    %v648 = vunpack.c.l.b16 %v265
    %v649 = vunpack.c.h.b16 %v265
    %v650 = vunpack.c.l.b16 %v266
    %v651 = vunpack.c.h.b16 %v266
    %v652 = vunpack.c.l.b16 %v267
    %v653 = vunpack.c.h.b16 %v267
    %v654 = vunpack.c.l.b16 %v268
    %v655 = vunpack.c.h.b16 %v268
    %v656 = vunpack.c.l.b16 %v269
    %v657 = vunpack.c.h.b16 %v269
    %v658 = vunpack.c.l.b16 %v270
    %v659 = vunpack.c.h.b16 %v270
    %v660 = vunpack.c.l.b16 %v271
    %v661 = vunpack.c.h.b16 %v271
    %v662 = vunpack.c.l.b16 %v272
    %v663 = vunpack.c.h.b16 %v272
    %v664 = vunpack.c.l.b16 %v273
    %v665 = vunpack.c.h.b16 %v273
    %v666 = vunpack.c.l.b16 %v274
    %v667 = vunpack.c.h.b16 %v274
    %v668 = vunpack.c.l.b16 %v275
    %v669 = vunpack.c.h.b16 %v275
    %v670 = vpack.c.b16 %v418, %v414
    %v671 = vpack.c.b16 %v419, %v415
    %v672 = vpack.c.b16 %v420, %v416
    %v673 = vpack.c.b16 %v421, %v417
    %v674 = vpack.c.b16 %v426, %v422
    %v675 = vpack.c.b16 %v427, %v423
    %v676 = vpack.c.b16 %v428, %v424
    %v677 = vpack.c.b16 %v429, %v425
    %v678 = vpack.c.b16 %v434, %v430
    %v679 = vpack.c.b16 %v435, %v431
    %v680 = vpack.c.b16 %v436, %v432
    %v681 = vpack.c.b16 %v437, %v433
    %v682 = vpack.c.b16 %v442, %v438
    %v683 = vpack.c.b16 %v443, %v439
    %v684 = vpack.c.b16 %v444, %v440
    %v685 = vpack.c.b16 %v445, %v441
    %v686 = vpack.c.b16 %v450, %v446
    %v687 = vpack.c.b16 %v451, %v447
    %v688 = vpack.c.b16 %v452, %v448
    %v689 = vpack.c.b16 %v453, %v449
    %v690 = vpack.c.b16 %v458, %v454
    %v691 = vpack.c.b16 %v459, %v455
    %v692 = vpack.c.b16 %v460, %v456
    %v693 = vpack.c.b16 %v461, %v457
    %v694 = vpack.c.b16 %v466, %v462
    %v695 = vpack.c.b16 %v467, %v463
    %v696 = vpack.c.b16 %v468, %v464
    %v697 = vpack.c.b16 %v469, %v465
    %v698 = vpack.c.b16 %v474, %v470
    %v699 = vpack.c.b16 %v475, %v471
    %v700 = vpack.c.b16 %v476, %v472
    %v701 = vpack.c.b16 %v477, %v473
    %v702 = vpack.c.b16 %v482, %v478
    %v703 = vpack.c.b16 %v483, %v479
    %v704 = vpack.c.b16 %v484, %v480
    %v705 = vpack.c.b16 %v485, %v481
    %v706 = vpack.c.b16 %v490, %v486
    %v707 = vpack.c.b16 %v491, %v487
    %v708 = vpack.c.b16 %v492, %v488
    %v709 = vpack.c.b16 %v493, %v489
    %v710 = vpack.c.b16 %v498, %v494
    %v711 = vpack.c.b16 %v499, %v495
    %v712 = vpack.c.b16 %v500, %v496
    %v713 = vpack.c.b16 %v501, %v497
    %v714 = vpack.c.b16 %v506, %v502
    %v715 = vpack.c.b16 %v507, %v503
    %v716 = vpack.c.b16 %v508, %v504
    %v717 = vpack.c.b16 %v509, %v505
    %v718 = vpack.c.b16 %v514, %v510
    %v719 = vpack.c.b16 %v515, %v511
    %v720 = vpack.c.b16 %v516, %v512
    %v721 = vpack.c.b16 %v517, %v513
    %v722 = vpack.c.b16 %v522, %v518
    %v723 = vpack.c.b16 %v523, %v519
    %v724 = vpack.c.b16 %v524, %v520
    %v725 = vpack.c.b16 %v525, %v521
    %v726 = vpack.c.b16 %v530, %v526
    %v727 = vpack.c.b16 %v531, %v527
    %v728 = vpack.c.b16 %v532, %v528
    %v729 = vpack.c.b16 %v533, %v529
    %v730 = vpack.c.b16 %v538, %v534
    %v731 = vpack.c.b16 %v539, %v535
    %v732 = vpack.c.b16 %v540, %v536
    %v733 = vpack.c.b16 %v541, %v537
    %v734 = vpack.c.b16 %v546, %v542
    %v735 = vpack.c.b16 %v547, %v543
    %v736 = vpack.c.b16 %v548, %v544
    %v737 = vpack.c.b16 %v549, %v545
    %v738 = vpack.c.b16 %v554, %v550
    %v739 = vpack.c.b16 %v555, %v551
    %v740 = vpack.c.b16 %v556, %v552
    %v741 = vpack.c.b16 %v557, %v553
    %v742 = vpack.c.b16 %v562, %v558
    %v743 = vpack.c.b16 %v563, %v559
    %v744 = vpack.c.b16 %v564, %v560
    %v745 = vpack.c.b16 %v565, %v561
    %v746 = vpack.c.b16 %v570, %v566
    %v747 = vpack.c.b16 %v571, %v567
    %v748 = vpack.c.b16 %v572, %v568
    %v749 = vpack.c.b16 %v573, %v569
    %v750 = vpack.c.b16 %v578, %v574
    %v751 = vpack.c.b16 %v579, %v575
    %v752 = vpack.c.b16 %v580, %v576
    %v753 = vpack.c.b16 %v581, %v577
    %v754 = vpack.c.b16 %v586, %v582
    %v755 = vpack.c.b16 %v587, %v583
    %v756 = vpack.c.b16 %v588, %v584
    %v757 = vpack.c.b16 %v589, %v585
    %v758 = vpack.c.b16 %v594, %v590
    %v759 = vpack.c.b16 %v595, %v591
    %v760 = vpack.c.b16 %v596, %v592
    %v761 = vpack.c.b16 %v597, %v593
    %v762 = vpack.c.b16 %v602, %v598
    %v763 = vpack.c.b16 %v603, %v599
    %v764 = vpack.c.b16 %v604, %v600
    %v765 = vpack.c.b16 %v605, %v601
    %v766 = vpack.c.b16 %v610, %v606
    %v767 = vpack.c.b16 %v611, %v607
    %v768 = vpack.c.b16 %v612, %v608
    %v769 = vpack.c.b16 %v613, %v609
    %v770 = vpack.c.b16 %v618, %v614
    %v771 = vpack.c.b16 %v619, %v615
    %v772 = vpack.c.b16 %v620, %v616
    %v773 = vpack.c.b16 %v621, %v617
    %v774 = vpack.c.b16 %v626, %v622
    %v775 = vpack.c.b16 %v627, %v623
    %v776 = vpack.c.b16 %v628, %v624
    %v777 = vpack.c.b16 %v629, %v625
    %v778 = vpack.c.b16 %v634, %v630
    %v779 = vpack.c.b16 %v635, %v631
    %v780 = vpack.c.b16 %v636, %v632
    %v781 = vpack.c.b16 %v637, %v633
    %v782 = vpack.c.b16 %v642, %v638
    %v783 = vpack.c.b16 %v643, %v639
    %v784 = vpack.c.b16 %v644, %v640
    %v785 = vpack.c.b16 %v645, %v641
    %v786 = vpack.c.b16 %v650, %v646
    %v787 = vpack.c.b16 %v651, %v647
    %v788 = vpack.c.b16 %v652, %v648
    %v789 = vpack.c.b16 %v653, %v649
    %v790 = vpack.c.b16 %v658, %v654
    %v791 = vpack.c.b16 %v659, %v655
    %v792 = vpack.c.b16 %v660, %v656
    %v793 = vpack.c.b16 %v661, %v657
    %v794 = vpack.c.b16 %v666, %v662
    %v795 = vpack.c.b16 %v667, %v663
    %v796 = vpack.c.b16 %v668, %v664
    %v797 = vpack.c.b16 %v669, %v665
    %926 = vmatpush.bf16.msra.mxu0 %v698
    %927 = vmatpush.bf16.msra.mxu0 %v694
    %928 = vmatpush.bf16.msra.mxu0 %v690
    %929 = vmatpush.bf16.msra.mxu0 %v686
    %930 = vmatpush.bf16.msra.mxu0 %v682
    %931 = vmatpush.bf16.msra.mxu0 %v678
    %932 = vmatpush.bf16.msra.mxu0 %v674
    %933 = vmatpush.bf16.msra.mxu0 %v670
    %934 = vmatmul.bf16.gmra.mxu0 %v144
    %v935 = vpop.f32.mrf.mxu0
    %v936 = vadd.f32 %v278, %v935
    %v937 = vpop.f32.mrf.mxu0
    %938 = vdwg.mxu0
    %939 = vmatpush.bf16.msra.mxu0 %v730
    %940 = vmatpush.bf16.msra.mxu0 %v726
    %941 = vmatpush.bf16.msra.mxu0 %v722
    %942 = vmatpush.bf16.msra.mxu0 %v718
    %943 = vmatpush.bf16.msra.mxu0 %v714
    %944 = vmatpush.bf16.msra.mxu0 %v710
    %945 = vmatpush.bf16.msra.mxu0 %v706
    %946 = vmatpush.bf16.msra.mxu0 %v702
    %947 = vmatmul.bf16.gmra.mxu0 %v145
    %v948 = vpop.f32.mrf.mxu0
    %v949 = vadd.f32 %v936, %v948
    %v950 = vpop.f32.mrf.mxu0
    %951 = vdwg.mxu0
    %952 = vmatpush.bf16.msra.mxu0 %v762
    %953 = vmatpush.bf16.msra.mxu0 %v758
    %954 = vmatpush.bf16.msra.mxu0 %v754
    %955 = vmatpush.bf16.msra.mxu0 %v750
    %956 = vmatpush.bf16.msra.mxu0 %v746
    %957 = vmatpush.bf16.msra.mxu0 %v742
    %958 = vmatpush.bf16.msra.mxu0 %v738
    %959 = vmatpush.bf16.msra.mxu0 %v734
    %960 = vmatmul.bf16.gmra.mxu0 %v146
    %v961 = vpop.f32.mrf.mxu0
    %v962 = vadd.f32 %v949, %v961
    %v963 = vpop.f32.mrf.mxu0
    %964 = vdwg.mxu0
    %965 = vmatpush.bf16.msra.mxu0 %v794
    %966 = vmatpush.bf16.msra.mxu0 %v790
    %967 = vmatpush.bf16.msra.mxu0 %v786
    %968 = vmatpush.bf16.msra.mxu0 %v782
    %969 = vmatpush.bf16.msra.mxu0 %v778
    %970 = vmatpush.bf16.msra.mxu0 %v774
    %971 = vmatpush.bf16.msra.mxu0 %v770
    %972 = vmatpush.bf16.msra.mxu0 %v766
    %973 = vmatmul.bf16.gmra.mxu0 %v147
    %v974 = vpop.f32.mrf.mxu0
    %v975 = vadd.f32 %v962, %v974
    %v976 = vpop.f32.mrf.mxu0
    %977 = vdwg.mxu0
    %978 = vmatpush.bf16.msra.mxu0 %v699
    %979 = vmatpush.bf16.msra.mxu0 %v695
    %980 = vmatpush.bf16.msra.mxu0 %v691
    %981 = vmatpush.bf16.msra.mxu0 %v687
    %982 = vmatpush.bf16.msra.mxu0 %v683
    %983 = vmatpush.bf16.msra.mxu0 %v679
    %984 = vmatpush.bf16.msra.mxu0 %v675
    %985 = vmatpush.bf16.msra.mxu0 %v671
    %986 = vmatmul.bf16.gmra.mxu0 %v144
    %v987 = vpop.f32.mrf.mxu0
    %v988 = vadd.f32 %v279, %v987
    %v989 = vpop.f32.mrf.mxu0
    %990 = vdwg.mxu0
    %991 = vmatpush.bf16.msra.mxu0 %v731
    %992 = vmatpush.bf16.msra.mxu0 %v727
    %993 = vmatpush.bf16.msra.mxu0 %v723
    %994 = vmatpush.bf16.msra.mxu0 %v719
    %995 = vmatpush.bf16.msra.mxu0 %v715
    %996 = vmatpush.bf16.msra.mxu0 %v711
    %997 = vmatpush.bf16.msra.mxu0 %v707
    %998 = vmatpush.bf16.msra.mxu0 %v703
    %999 = vmatmul.bf16.gmra.mxu0 %v145
    %v1000 = vpop.f32.mrf.mxu0
    %v1001 = vadd.f32 %v988, %v1000
    %v1002 = vpop.f32.mrf.mxu0
    %1003 = vdwg.mxu0
    %1004 = vmatpush.bf16.msra.mxu0 %v763
    %1005 = vmatpush.bf16.msra.mxu0 %v759
    %1006 = vmatpush.bf16.msra.mxu0 %v755
    %1007 = vmatpush.bf16.msra.mxu0 %v751
    %1008 = vmatpush.bf16.msra.mxu0 %v747
    %1009 = vmatpush.bf16.msra.mxu0 %v743
    %1010 = vmatpush.bf16.msra.mxu0 %v739
    %1011 = vmatpush.bf16.msra.mxu0 %v735
    %1012 = vmatmul.bf16.gmra.mxu0 %v146
    %v1013 = vpop.f32.mrf.mxu0
    %v1014 = vadd.f32 %v1001, %v1013
    %v1015 = vpop.f32.mrf.mxu0
    %1016 = vdwg.mxu0
    %1017 = vmatpush.bf16.msra.mxu0 %v795
    %1018 = vmatpush.bf16.msra.mxu0 %v791
    %1019 = vmatpush.bf16.msra.mxu0 %v787
    %1020 = vmatpush.bf16.msra.mxu0 %v783
    %1021 = vmatpush.bf16.msra.mxu0 %v779
    %1022 = vmatpush.bf16.msra.mxu0 %v775
    %1023 = vmatpush.bf16.msra.mxu0 %v771
    %1024 = vmatpush.bf16.msra.mxu0 %v767
    %1025 = vmatmul.bf16.gmra.mxu0 %v147
    %v1026 = vpop.f32.mrf.mxu0
    %v1027 = vadd.f32 %v1014, %v1026
    %v1028 = vpop.f32.mrf.mxu0
    %1029 = vdwg.mxu0
    %1030 = vmatpush.bf16.msra.mxu0 %v700
    %1031 = vmatpush.bf16.msra.mxu0 %v696
    %1032 = vmatpush.bf16.msra.mxu0 %v692
    %1033 = vmatpush.bf16.msra.mxu0 %v688
    %1034 = vmatpush.bf16.msra.mxu0 %v684
    %1035 = vmatpush.bf16.msra.mxu0 %v680
    %1036 = vmatpush.bf16.msra.mxu0 %v676
    %1037 = vmatpush.bf16.msra.mxu0 %v672
    %1038 = vmatmul.bf16.gmra.mxu0 %v144
    %v1039 = vpop.f32.mrf.mxu0
    %v1040 = vadd.f32 %v280, %v1039
    %v1041 = vpop.f32.mrf.mxu0
    %1042 = vdwg.mxu0
    %1043 = vmatpush.bf16.msra.mxu0 %v732
    %1044 = vmatpush.bf16.msra.mxu0 %v728
    %1045 = vmatpush.bf16.msra.mxu0 %v724
    %1046 = vmatpush.bf16.msra.mxu0 %v720
    %1047 = vmatpush.bf16.msra.mxu0 %v716
    %1048 = vmatpush.bf16.msra.mxu0 %v712
    %1049 = vmatpush.bf16.msra.mxu0 %v708
    %1050 = vmatpush.bf16.msra.mxu0 %v704
    %1051 = vmatmul.bf16.gmra.mxu0 %v145
    %v1052 = vpop.f32.mrf.mxu0
    %v1053 = vadd.f32 %v1040, %v1052
    %v1054 = vpop.f32.mrf.mxu0
    %1055 = vdwg.mxu0
    %1056 = vmatpush.bf16.msra.mxu0 %v764
    %1057 = vmatpush.bf16.msra.mxu0 %v760
    %1058 = vmatpush.bf16.msra.mxu0 %v756
    %1059 = vmatpush.bf16.msra.mxu0 %v752
    %1060 = vmatpush.bf16.msra.mxu0 %v748
    %1061 = vmatpush.bf16.msra.mxu0 %v744
    %1062 = vmatpush.bf16.msra.mxu0 %v740
    %1063 = vmatpush.bf16.msra.mxu0 %v736
    %1064 = vmatmul.bf16.gmra.mxu0 %v146
    %v1065 = vpop.f32.mrf.mxu0
    %v1066 = vadd.f32 %v1053, %v1065
    %v1067 = vpop.f32.mrf.mxu0
    %1068 = vdwg.mxu0
    %1069 = vmatpush.bf16.msra.mxu0 %v796
    %1070 = vmatpush.bf16.msra.mxu0 %v792
    %1071 = vmatpush.bf16.msra.mxu0 %v788
    %1072 = vmatpush.bf16.msra.mxu0 %v784
    %1073 = vmatpush.bf16.msra.mxu0 %v780
    %1074 = vmatpush.bf16.msra.mxu0 %v776
    %1075 = vmatpush.bf16.msra.mxu0 %v772
    %1076 = vmatpush.bf16.msra.mxu0 %v768
    %1077 = vmatmul.bf16.gmra.mxu0 %v147
    %v1078 = vpop.f32.mrf.mxu0
    %v1079 = vadd.f32 %v1066, %v1078
    %v1080 = vpop.f32.mrf.mxu0
    %1081 = vdwg.mxu0
    %1082 = vmatpush.bf16.msra.mxu0 %v701
    %1083 = vmatpush.bf16.msra.mxu0 %v697
    %1084 = vmatpush.bf16.msra.mxu0 %v693
    %1085 = vmatpush.bf16.msra.mxu0 %v689
    %1086 = vmatpush.bf16.msra.mxu0 %v685
    %1087 = vmatpush.bf16.msra.mxu0 %v681
    %1088 = vmatpush.bf16.msra.mxu0 %v677
    %1089 = vmatpush.bf16.msra.mxu0 %v673
    %1090 = vmatmul.bf16.gmra.mxu0 %v144
    %v1091 = vpop.f32.mrf.mxu0
    %v1092 = vadd.f32 %v281, %v1091
    %v1093 = vpop.f32.mrf.mxu0
    %1094 = vdwg.mxu0
    %1095 = vmatpush.bf16.msra.mxu0 %v733
    %1096 = vmatpush.bf16.msra.mxu0 %v729
    %1097 = vmatpush.bf16.msra.mxu0 %v725
    %1098 = vmatpush.bf16.msra.mxu0 %v721
    %1099 = vmatpush.bf16.msra.mxu0 %v717
    %1100 = vmatpush.bf16.msra.mxu0 %v713
    %1101 = vmatpush.bf16.msra.mxu0 %v709
    %1102 = vmatpush.bf16.msra.mxu0 %v705
    %1103 = vmatmul.bf16.gmra.mxu0 %v145
    %v1104 = vpop.f32.mrf.mxu0
    %v1105 = vadd.f32 %v1092, %v1104
    %v1106 = vpop.f32.mrf.mxu0
    %1107 = vdwg.mxu0
    %1108 = vmatpush.bf16.msra.mxu0 %v765
    %1109 = vmatpush.bf16.msra.mxu0 %v761
    %1110 = vmatpush.bf16.msra.mxu0 %v757
    %1111 = vmatpush.bf16.msra.mxu0 %v753
    %1112 = vmatpush.bf16.msra.mxu0 %v749
    %1113 = vmatpush.bf16.msra.mxu0 %v745
    %1114 = vmatpush.bf16.msra.mxu0 %v741
    %1115 = vmatpush.bf16.msra.mxu0 %v737
    %1116 = vmatmul.bf16.gmra.mxu0 %v146
    %v1117 = vpop.f32.mrf.mxu0
    %v1118 = vadd.f32 %v1105, %v1117
    %v1119 = vpop.f32.mrf.mxu0
    %1120 = vdwg.mxu0
    %1121 = vmatpush.bf16.msra.mxu0 %v797
    %1122 = vmatpush.bf16.msra.mxu0 %v793
    %1123 = vmatpush.bf16.msra.mxu0 %v789
    %1124 = vmatpush.bf16.msra.mxu0 %v785
    %1125 = vmatpush.bf16.msra.mxu0 %v781
    %1126 = vmatpush.bf16.msra.mxu0 %v777
    %1127 = vmatpush.bf16.msra.mxu0 %v773
    %1128 = vmatpush.bf16.msra.mxu0 %v769
    %1129 = vmatmul.bf16.gmra.mxu0 %v147
    %v1130 = vpop.f32.mrf.mxu0
    %v1131 = vadd.f32 %v1118, %v1130
    %v1132 = vpop.f32.mrf.mxu0
    %1133 = vdwg.mxu0
    %v1134 = vmax.f32 %v975, 0.0
    %v1135 = vmax.f32 %v1027, 0.0
    %v1136 = vmax.f32 %v1079, 0.0
    %v1137 = vmax.f32 %v1131, 0.0
    %v1138 = vpack.c.bf16 %v1134, %v1134
    %v1139 = vpack.c.bf16 %v1135, %v1135
    %v1140 = vpack.c.bf16 %v1136, %v1136
    %v1141 = vpack.c.bf16 %v1137, %v1137
    %v1142 = vld [vmem:[%s5] sm:$0xf]
    %v1143 = vld [vmem:[%s5 + $0x4] sm:$0xf]
    %v1144 = vld [vmem:[%s5 + $0x8] sm:$0xf]
    %v1145 = vld [vmem:[%s5 + $0xc] sm:$0xf]
    %v1146 = vld [vmem:[%s5 + $0x10] sm:$0xf]
    %v1147 = vld [vmem:[%s5 + $0x14] sm:$0xf]
    %v1148 = vld [vmem:[%s5 + $0x18] sm:$0xf]
    %v1149 = vld [vmem:[%s5 + $0x1c] sm:$0xf]
    %v1150 = vld [vmem:[%s5 + $0x20] sm:$0xf]
    %v1151 = vld [vmem:[%s5 + $0x24] sm:$0xf]
    %v1152 = vld [vmem:[%s5 + $0x28] sm:$0xf]
    %v1153 = vld [vmem:[%s5 + $0x2c] sm:$0xf]
    %v1154 = vld [vmem:[%s5 + $0x30] sm:$0xf]
    %v1155 = vld [vmem:[%s5 + $0x34] sm:$0xf]
    %v1156 = vld [vmem:[%s5 + $0x38] sm:$0xf]
    %v1157 = vld [vmem:[%s5 + $0x3c] sm:$0xf]
    %v1158 = vld [vmem:[%s5 + $0x40] sm:$0xf]
    %v1159 = vld [vmem:[%s5 + $0x44] sm:$0xf]
    %v1160 = vld [vmem:[%s5 + $0x48] sm:$0xf]
    %v1161 = vld [vmem:[%s5 + $0x4c] sm:$0xf]
    %v1162 = vld [vmem:[%s5 + $0x50] sm:$0xf]
    %v1163 = vld [vmem:[%s5 + $0x54] sm:$0xf]
    %v1164 = vld [vmem:[%s5 + $0x58] sm:$0xf]
    %v1165 = vld [vmem:[%s5 + $0x5c] sm:$0xf]
    %v1166 = vld [vmem:[%s5 + $0x60] sm:$0xf]
    %v1167 = vld [vmem:[%s5 + $0x64] sm:$0xf]
    %v1168 = vld [vmem:[%s5 + $0x68] sm:$0xf]
    %v1169 = vld [vmem:[%s5 + $0x6c] sm:$0xf]
    %v1170 = vld [vmem:[%s5 + $0x70] sm:$0xf]
    %v1171 = vld [vmem:[%s5 + $0x74] sm:$0xf]
    %v1172 = vld [vmem:[%s5 + $0x78] sm:$0xf]
    %v1173 = vld [vmem:[%s5 + $0x7c] sm:$0xf]
    %v1174 = vld [vmem:[%s5 + $0x80] sm:$0xf]
    %v1175 = vld [vmem:[%s5 + $0x84] sm:$0xf]
    %v1176 = vld [vmem:[%s5 + $0x88] sm:$0xf]
    %v1177 = vld [vmem:[%s5 + $0x8c] sm:$0xf]
    %v1178 = vld [vmem:[%s5 + $0x90] sm:$0xf]
    %v1179 = vld [vmem:[%s5 + $0x94] sm:$0xf]
    %v1180 = vld [vmem:[%s5 + $0x98] sm:$0xf]
    %v1181 = vld [vmem:[%s5 + $0x9c] sm:$0xf]
    %v1182 = vld [vmem:[%s5 + $0xa0] sm:$0xf]
    %v1183 = vld [vmem:[%s5 + $0xa4] sm:$0xf]
    %v1184 = vld [vmem:[%s5 + $0xa8] sm:$0xf]
    %v1185 = vld [vmem:[%s5 + $0xac] sm:$0xf]
    %v1186 = vld [vmem:[%s5 + $0xb0] sm:$0xf]
    %v1187 = vld [vmem:[%s5 + $0xb4] sm:$0xf]
    %v1188 = vld [vmem:[%s5 + $0xb8] sm:$0xf]
    %v1189 = vld [vmem:[%s5 + $0xbc] sm:$0xf]
    %v1190 = vld [vmem:[%s5 + $0xc0] sm:$0xf]
    %v1191 = vld [vmem:[%s5 + $0xc4] sm:$0xf]
    %v1192 = vld [vmem:[%s5 + $0xc8] sm:$0xf]
    %v1193 = vld [vmem:[%s5 + $0xcc] sm:$0xf]
    %v1194 = vld [vmem:[%s5 + $0xd0] sm:$0xf]
    %v1195 = vld [vmem:[%s5 + $0xd4] sm:$0xf]
    %v1196 = vld [vmem:[%s5 + $0xd8] sm:$0xf]
    %v1197 = vld [vmem:[%s5 + $0xdc] sm:$0xf]
    %v1198 = vld [vmem:[%s5 + $0xe0] sm:$0xf]
    %v1199 = vld [vmem:[%s5 + $0xe4] sm:$0xf]
    %v1200 = vld [vmem:[%s5 + $0xe8] sm:$0xf]
    %v1201 = vld [vmem:[%s5 + $0xec] sm:$0xf]
    %v1202 = vld [vmem:[%s5 + $0xf0] sm:$0xf]
    %v1203 = vld [vmem:[%s5 + $0xf4] sm:$0xf]
    %v1204 = vld [vmem:[%s5 + $0xf8] sm:$0xf]
    %v1205 = vld [vmem:[%s5 + $0xfc] sm:$0xf]
    %v1206 = vld [vmem:[%s6] sm:$0x1]
    %v1208 = vperm.slane %v1206, 0
    %v1274 = vunpack.c.l.b16 %v1142
    %v1275 = vunpack.c.l.b16 %v1143
    %v1276 = vunpack.c.l.b16 %v1144
    %v1277 = vunpack.c.l.b16 %v1145
    %v1278 = vunpack.c.l.b16 %v1146
    %v1279 = vunpack.c.l.b16 %v1147
    %v1280 = vunpack.c.l.b16 %v1148
    %v1281 = vunpack.c.l.b16 %v1149
    %v1282 = vunpack.c.l.b16 %v1150
    %v1283 = vunpack.c.l.b16 %v1151
    %v1284 = vunpack.c.l.b16 %v1152
    %v1285 = vunpack.c.l.b16 %v1153
    %v1286 = vunpack.c.l.b16 %v1154
    %v1287 = vunpack.c.l.b16 %v1155
    %v1288 = vunpack.c.l.b16 %v1156
    %v1289 = vunpack.c.l.b16 %v1157
    %v1290 = vunpack.c.l.b16 %v1158
    %v1291 = vunpack.c.l.b16 %v1159
    %v1292 = vunpack.c.l.b16 %v1160
    %v1293 = vunpack.c.l.b16 %v1161
    %v1294 = vunpack.c.l.b16 %v1162
    %v1295 = vunpack.c.l.b16 %v1163
    %v1296 = vunpack.c.l.b16 %v1164
    %v1297 = vunpack.c.l.b16 %v1165
    %v1298 = vunpack.c.l.b16 %v1166
    %v1299 = vunpack.c.l.b16 %v1167
    %v1300 = vunpack.c.l.b16 %v1168
    %v1301 = vunpack.c.l.b16 %v1169
    %v1302 = vunpack.c.l.b16 %v1170
    %v1303 = vunpack.c.l.b16 %v1171
    %v1304 = vunpack.c.l.b16 %v1172
    %v1305 = vunpack.c.l.b16 %v1173
    %v1306 = vunpack.c.l.b16 %v1174
    %v1307 = vunpack.c.l.b16 %v1175
    %v1308 = vunpack.c.l.b16 %v1176
    %v1309 = vunpack.c.l.b16 %v1177
    %v1310 = vunpack.c.l.b16 %v1178
    %v1311 = vunpack.c.l.b16 %v1179
    %v1312 = vunpack.c.l.b16 %v1180
    %v1313 = vunpack.c.l.b16 %v1181
    %v1314 = vunpack.c.l.b16 %v1182
    %v1315 = vunpack.c.l.b16 %v1183
    %v1316 = vunpack.c.l.b16 %v1184
    %v1317 = vunpack.c.l.b16 %v1185
    %v1318 = vunpack.c.l.b16 %v1186
    %v1319 = vunpack.c.l.b16 %v1187
    %v1320 = vunpack.c.l.b16 %v1188
    %v1321 = vunpack.c.l.b16 %v1189
    %v1322 = vunpack.c.l.b16 %v1190
    %v1323 = vunpack.c.l.b16 %v1191
    %v1324 = vunpack.c.l.b16 %v1192
    %v1325 = vunpack.c.l.b16 %v1193
    %v1326 = vunpack.c.l.b16 %v1194
    %v1327 = vunpack.c.l.b16 %v1195
    %v1328 = vunpack.c.l.b16 %v1196
    %v1329 = vunpack.c.l.b16 %v1197
    %v1330 = vunpack.c.l.b16 %v1198
    %v1331 = vunpack.c.l.b16 %v1199
    %v1332 = vunpack.c.l.b16 %v1200
    %v1333 = vunpack.c.l.b16 %v1201
    %v1334 = vunpack.c.l.b16 %v1202
    %v1335 = vunpack.c.l.b16 %v1203
    %v1336 = vunpack.c.l.b16 %v1204
    %v1337 = vunpack.c.l.b16 %v1205
    %v1338 = vpack.c.b16 %v1275, %v1274
    %v1339 = vpack.c.b16 %v1277, %v1276
    %v1340 = vpack.c.b16 %v1279, %v1278
    %v1341 = vpack.c.b16 %v1281, %v1280
    %v1342 = vpack.c.b16 %v1283, %v1282
    %v1343 = vpack.c.b16 %v1285, %v1284
    %v1344 = vpack.c.b16 %v1287, %v1286
    %v1345 = vpack.c.b16 %v1289, %v1288
    %v1346 = vpack.c.b16 %v1291, %v1290
    %v1347 = vpack.c.b16 %v1293, %v1292
    %v1348 = vpack.c.b16 %v1295, %v1294
    %v1349 = vpack.c.b16 %v1297, %v1296
    %v1350 = vpack.c.b16 %v1299, %v1298
    %v1351 = vpack.c.b16 %v1301, %v1300
    %v1352 = vpack.c.b16 %v1303, %v1302
    %v1353 = vpack.c.b16 %v1305, %v1304
    %v1354 = vpack.c.b16 %v1307, %v1306
    %v1355 = vpack.c.b16 %v1309, %v1308
    %v1356 = vpack.c.b16 %v1311, %v1310
    %v1357 = vpack.c.b16 %v1313, %v1312
    %v1358 = vpack.c.b16 %v1315, %v1314
    %v1359 = vpack.c.b16 %v1317, %v1316
    %v1360 = vpack.c.b16 %v1319, %v1318
    %v1361 = vpack.c.b16 %v1321, %v1320
    %v1362 = vpack.c.b16 %v1323, %v1322
    %v1363 = vpack.c.b16 %v1325, %v1324
    %v1364 = vpack.c.b16 %v1327, %v1326
    %v1365 = vpack.c.b16 %v1329, %v1328
    %v1366 = vpack.c.b16 %v1331, %v1330
    %v1367 = vpack.c.b16 %v1333, %v1332
    %v1368 = vpack.c.b16 %v1335, %v1334
    %v1369 = vpack.c.b16 %v1337, %v1336
    %1402 = vmatpush.bf16.msra.mxu0 %v1345
    %1403 = vmatpush.bf16.msra.mxu0 %v1344
    %1404 = vmatpush.bf16.msra.mxu0 %v1343
    %1405 = vmatpush.bf16.msra.mxu0 %v1342
    %1406 = vmatpush.bf16.msra.mxu0 %v1341
    %1407 = vmatpush.bf16.msra.mxu0 %v1340
    %1408 = vmatpush.bf16.msra.mxu0 %v1339
    %1409 = vmatpush.bf16.msra.mxu0 %v1338
    %1410 = vmatmul.bf16.gmra.mxu0 %v1138
    %v1411 = vpop.f32.mrf.mxu0
    %v1412 = vadd.f32 %v1208, %v1411
    %v1413 = vpop.f32.mrf.mxu0
    %1414 = vdwg.mxu0
    %1415 = vmatpush.bf16.msra.mxu0 %v1353
    %1416 = vmatpush.bf16.msra.mxu0 %v1352
    %1417 = vmatpush.bf16.msra.mxu0 %v1351
    %1418 = vmatpush.bf16.msra.mxu0 %v1350
    %1419 = vmatpush.bf16.msra.mxu0 %v1349
    %1420 = vmatpush.bf16.msra.mxu0 %v1348
    %1421 = vmatpush.bf16.msra.mxu0 %v1347
    %1422 = vmatpush.bf16.msra.mxu0 %v1346
    %1423 = vmatmul.bf16.gmra.mxu0 %v1139
    %v1424 = vpop.f32.mrf.mxu0
    %v1425 = vadd.f32 %v1412, %v1424
    %v1426 = vpop.f32.mrf.mxu0
    %1427 = vdwg.mxu0
    %1428 = vmatpush.bf16.msra.mxu0 %v1361
    %1429 = vmatpush.bf16.msra.mxu0 %v1360
    %1430 = vmatpush.bf16.msra.mxu0 %v1359
    %1431 = vmatpush.bf16.msra.mxu0 %v1358
    %1432 = vmatpush.bf16.msra.mxu0 %v1357
    %1433 = vmatpush.bf16.msra.mxu0 %v1356
    %1434 = vmatpush.bf16.msra.mxu0 %v1355
    %1435 = vmatpush.bf16.msra.mxu0 %v1354
    %1436 = vmatmul.bf16.gmra.mxu0 %v1140
    %v1437 = vpop.f32.mrf.mxu0
    %v1438 = vadd.f32 %v1425, %v1437
    %v1439 = vpop.f32.mrf.mxu0
    %1440 = vdwg.mxu0
    %1441 = vmatpush.bf16.msra.mxu0 %v1369
    %1442 = vmatpush.bf16.msra.mxu0 %v1368
    %1443 = vmatpush.bf16.msra.mxu0 %v1367
    %1444 = vmatpush.bf16.msra.mxu0 %v1366
    %1445 = vmatpush.bf16.msra.mxu0 %v1365
    %1446 = vmatpush.bf16.msra.mxu0 %v1364
    %1447 = vmatpush.bf16.msra.mxu0 %v1363
    %1448 = vmatpush.bf16.msra.mxu0 %v1362
    %1449 = vmatmul.bf16.gmra.mxu0 %v1141
    %v1450 = vpop.f32.mrf.mxu0
    %v1451 = vadd.f32 %v1438, %v1450
    %v1452 = vpop.f32.mrf.mxu0
    %1453 = vdwg.mxu0
    %1455 = vset.pattern.permute.xlu0 8
    %1456 = vperm.xlu0 %1455, %v1451
    %v1457 = vpop.permute.xlu0 %1456
    %v1459 = vadd.f32 %v1457, %v1451
    %vm1460 = vcmask 58368
    %v1461 = vsel %vm1460, %v1451, 0.0
    %1462 = vadd.xlane.f32.xlu0 %v1461
    %v1463 = vpop.xlane.xlu0 %1462
    %v1464 = vrot.slane %v1463, 4
    %v1465 = vadd.f32 %v1463, %v1464
    %v1466 = vrot.slane %v1465, 2
    %v1467 = vadd.f32 %v1465, %v1466
    %v1468 = vrot.slane %v1467, 1
    %v1469 = vadd.f32 %v1467, %v1468
    %s1470 = vtos %v1469
    %v1471 = vrcp.pop 16.0
    %v1472 = vmul.f32 16.0, %v1471
    %v1473 = vsub.f32 1.0, %v1472
    %v1474 = vmul.f32 %v1471, %v1473
    %v1475 = vadd.f32 %v1471, %v1474
    %vm1476 = vweird.f32 %v1471
    %v1477 = vsel %vm1476, %v1471, %v1475
    %s1478 = vtos %v1477
    %s1479 = smul.f32 %s1470, %s1478
    %v1480 = vstv %s1479
    %v1481 = vsub.f32 %v1459, %v1480
    %1482 = vst.msk [vmem:[#allocation5] sm:$0x3] %vm1460, %v1481
    // Predicated region
    $region34: #{tpu_custom_call.1} parent=1 // pred_check
      _
    $region35: #{tpu_custom_call.1} parent=1 // pred_check_branch
      %1484 = sbr.rel (0) target = $region37
    $region36: #{tpu_custom_call.1} parent=1 // pred_region
      %1486 = vsyncadd [#allocation4], 0
      %s1488 = sshll.u32 [#allocation5], 4
      %s1489 = int_to_ptr.vmem [resolvable:$true] %s1488
      %s1490 = sshll.u32 %s7, 4
      %s1491 = int_to_ptr.hbm [resolvable:$true] %s1490
      %1493 = dma.vmem_to_hbm [thread:$0]  %s1489, 32, %s1491, [#allocation4]
    $region37: #{tpu_custom_call.1} parent=1 // pred_fallthru
      _
    // Predicated region
    $region38: #{tpu_custom_call.1} parent=1 // pred_check
      _
    $region39: #{tpu_custom_call.1} parent=1 // pred_check_branch
      %1495 = sbr.rel (0) target = $region41
    $region40: #{tpu_custom_call.1} parent=1 // pred_region
      %1497 = dma.done [#allocation4], 32
    $region41: #{tpu_custom_call.1} parent=1 // pred_fallthru
      _
    %1498 = vsyncpa [#allocation3], 1
    %1499 = vsyncpa [#allocation4], 1

</llo_original>
